<compile_context>
chip_gen: v7x
topology: tpu7x:2x2x1
jax: 0.10.0
libtpu: 0.0.40
codegen_flags: <defaults>
</compile_context>

<pallas_src>
import jax
import jax.numpy as jnp
from jax.experimental import pallas as pl
from jax.experimental.pallas import tpu as pltpu

LANE = 128  # TPU lane width; all padded feature dims are multiples of this.


# ----------------------------------------------------------------------------
# Kernel
# ----------------------------------------------------------------------------
def _vae_kernel(x_ref, eps_ref, w1_ref, wh_ref, w3_ref, w4_ref,
                ml_ref, recon_ref):
    """One batch tile of the fused VAE forward.

    x_ref    : [TB, 128]  bf16   x padded to 128 lanes, with a constant-1 lane
                                 at index D (folds the fc1 bias into the matmul).
    eps_ref  : [TB, 128]  f32    eps zero-padded to 128 lanes.
    w1_ref   : [128, 128] bf16   fc1 weights+bias (augmented, see pack_params).
    wh_ref   : [128, 256] bf16   fused fc21|fc22 weights+biases.
    w3_ref   : [128, 128] bf16   fc3 weights+bias (augmented).
    w4_ref   : [128, 128] bf16   fc4 weights+bias (augmented).
    ml_ref   : [TB, 256]  f32    output slab: mu in lanes [0,128), logvar in [128,256).
    recon_ref: [TB, 128]  f32    output slab: reconstruction in lanes [0, D).
    """
    bf16 = jnp.bfloat16
    x = x_ref[...]          # bf16, includes the ones-lane
    eps = eps_ref[...]      # f32

    # fc1 + relu (bias folded via the ones-lane; also emits a constant-1 lane
    # at index H so the next layer's bias folds in the same way).
    h1 = jnp.dot(x, w1_ref[...], preferred_element_type=jnp.float32)
    h1 = jnp.maximum(h1, 0.0)

    # Fused encoder heads: one MXU pass produces both mu and logvar.
    ml = jnp.dot(h1.astype(bf16), wh_ref[...], preferred_element_type=jnp.float32)
    mu = ml[:, :LANE]        # lane-aligned slices (no relayout)
    logvar = ml[:, LANE:]

    # Reparameterize in f32: z = mu + eps * exp(0.5 * logvar).
    # Padded lanes: logvar=0 -> std=1, eps=0 -> z keeps mu's padded lanes,
    # including the constant-1 lane at index L that carries the fc3 bias.
    z = mu + eps * jnp.exp(0.5 * logvar)

    # Decoder: fc3 + relu, then fc4 (biases folded via the constant lanes).
    h3 = jnp.maximum(
        jnp.dot(z.astype(bf16), w3_ref[...], preferred_element_type=jnp.float32),
        0.0)
    recon = jnp.dot(h3.astype(bf16), w4_ref[...],
                    preferred_element_type=jnp.float32)

    ml_ref[...] = ml
    recon_ref[...] = recon


# ----------------------------------------------------------------------------
# Host-side packing of weights into padded/augmented bf16 MXU tiles
# ----------------------------------------------------------------------------
def pack_params(params, input_dim, latent_dim, hidden=16):
    """Builds the padded weight matrices with biases folded in.

    Augmentation scheme (all zero-padded to 128 lanes):
      x_aug lane D      == 1  ->  row D of w1a holds b1, and w1a[D, H] = 1
      h1    lane H      == 1  ->  row H of wha holds b21|b22, and wha[H, L] = 1
      z     lane L      == 1  ->  row L of w3a holds b3, and w3a[L, H] = 1
      h3    lane H      == 1  ->  row H of w4a holds b4
    """
    D, L, H = input_dim, latent_dim, hidden
    assert D + 1 <= LANE and L + 1 <= LANE and H + 1 <= LANE
    f32 = jnp.float32

    w1a = jnp.zeros((LANE, LANE), f32)
    w1a = w1a.at[:D, :H].set(params["w1"])
    w1a = w1a.at[D, :H].set(params["b1"])
    w1a = w1a.at[D, H].set(1.0)

    wha = jnp.zeros((LANE, 2 * LANE), f32)
    wha = wha.at[:H, :L].set(params["w21"])
    wha = wha.at[H, :L].set(params["b21"])
    wha = wha.at[H, L].set(1.0)                       # constant-1 lane for fc3 bias
    wha = wha.at[:H, LANE:LANE + L].set(params["w22"])
    wha = wha.at[H, LANE:LANE + L].set(params["b22"])

    w3a = jnp.zeros((LANE, LANE), f32)
    w3a = w3a.at[:L, :H].set(params["w3"])
    w3a = w3a.at[L, :H].set(params["b3"])
    w3a = w3a.at[L, H].set(1.0)                       # constant-1 lane for fc4 bias

    w4a = jnp.zeros((LANE, LANE), f32)
    w4a = w4a.at[:H, :D].set(params["w4"])
    w4a = w4a.at[H, :D].set(params["b4"])

    bf = jnp.bfloat16
    return w1a.astype(bf), wha.astype(bf), w3a.astype(bf), w4a.astype(bf)


# ----------------------------------------------------------------------------
# Wrapper
# ----------------------------------------------------------------------------
def vae_forward(x, eps, packed, *, input_dim, latent_dim, hidden=16,
                block_rows=512):
    """Fused VAE forward. x: [B, D] f32, eps: [B, L] f32.

    Returns (reconstruction [B, D], mu [B, L], logvar [B, L]), all f32.
    """
    D, L = input_dim, latent_dim
    del hidden  # baked into the packed weights
    B = x.shape[0]
    w1a, wha, w3a, w4a = packed

    # Batch tile: multiple of 8 sublanes, capped so the per-core VMEM footprint
    # (tile + double buffers + resident weights) stays far under v7x's 64 MiB.
    B8 = ((B + 7) // 8) * 8
    TB = min(block_rows, B8)
    Bp = ((B + TB - 1) // TB) * TB
    grid = (Bp // TB,)

    # Lane-dense, zero-padded inputs; x gets the ones-lane for folded biases.
    xp = jnp.zeros((Bp, LANE), jnp.float32)
    xp = xp.at[:B, :D].set(x)
    xp = xp.at[:B, D].set(1.0)
    xp = xp.astype(jnp.bfloat16)
    ep = jnp.zeros((Bp, LANE), jnp.float32).at[:B, :L].set(eps)

    ml, recon = pl.pallas_call(
        _vae_kernel,
        out_shape=(
            jax.ShapeDtypeStruct((Bp, 2 * LANE), jnp.float32),  # mu|logvar slab
            jax.ShapeDtypeStruct((Bp, LANE), jnp.float32),      # recon slab
        ),
        grid=grid,
        in_specs=[
            pl.BlockSpec((TB, LANE), lambda i: (i, 0)),         # x tile
            pl.BlockSpec((TB, LANE), lambda i: (i, 0)),         # eps tile
            pl.BlockSpec((LANE, LANE), lambda i: (0, 0)),       # w1 (resident)
            pl.BlockSpec((LANE, 2 * LANE), lambda i: (0, 0)),   # w21|w22 (resident)
            pl.BlockSpec((LANE, LANE), lambda i: (0, 0)),       # w3 (resident)
            pl.BlockSpec((LANE, LANE), lambda i: (0, 0)),       # w4 (resident)
        ],
        out_specs=(
            pl.BlockSpec((TB, 2 * LANE), lambda i: (i, 0)),
            pl.BlockSpec((TB, LANE), lambda i: (i, 0)),
        ),
        compiler_params=pltpu.CompilerParams(
            dimension_semantics=("parallel",)),
    )(xp, ep, w1a, wha, w3a, w4a)

    recon_out = recon[:B, :D]
    mu_out = ml[:B, :L]
    logvar_out = ml[:B, LANE:LANE + L]
    return recon_out, mu_out, logvar_out


# ----------------------------------------------------------------------------
# Init + reference
# ----------------------------------------------------------------------------
def init_params(key, input_dim=3, latent_dim=2, hidden=16):
    """PyTorch-style Linear init: U(-1/sqrt(fan_in), 1/sqrt(fan_in)).

    Weights stored as [in_features, out_features]; biases as [out_features].
    """
    def linear(k, fan_in, fan_out):
        kw, kb = jax.random.split(k)
        bound = 1.0 / jnp.sqrt(float(fan_in))
        w = jax.random.uniform(kw, (fan_in, fan_out), jnp.float32, -bound, bound)
        b = jax.random.uniform(kb, (fan_out,), jnp.float32, -bound, bound)
        return w, b

    k1, k21, k22, k3, k4 = jax.random.split(key, 5)
    w1, b1 = linear(k1, input_dim, hidden)
    w21, b21 = linear(k21, hidden, latent_dim)
    w22, b22 = linear(k22, hidden, latent_dim)
    w3, b3 = linear(k3, latent_dim, hidden)
    w4, b4 = linear(k4, hidden, input_dim)
    return dict(w1=w1, b1=b1, w21=w21, b21=b21, w22=w22, b22=b22,
                w3=w3, b3=b3, w4=w4, b4=b4)


def vae_reference(x, eps, p):
    """Pure-JAX reference matching the kernel's mixed precision
    (bf16 matmul operands, f32 accumulation, f32 elementwise)."""
    bf, f32 = jnp.bfloat16, jnp.float32

    def lin(a, w, b):
        return (jnp.dot(a.astype(bf), w.astype(bf), preferred_element_type=f32)
                + b.astype(bf).astype(f32))

    h1 = jnp.maximum(lin(x, p["w1"], p["b1"]), 0.0)
    mu = lin(h1, p["w21"], p["b21"])
    logvar = lin(h1, p["w22"], p["b22"])
    z = mu + eps * jnp.exp(0.5 * logvar)
    h3 = jnp.maximum(lin(z, p["w3"], p["b3"]), 0.0)
    recon = lin(h3, p["w4"], p["b4"])
    return recon, mu, logvar


def _check(x, eps, params, packed, input_dim, latent_dim, block_rows):
    recon, mu, logvar = vae_forward(
        x, eps, packed, input_dim=input_dim, latent_dim=latent_dim,
        block_rows=block_rows)
    jax.block_until_ready((recon, mu, logvar))
    r_ref, mu_ref, lv_ref = vae_reference(x, eps, params)
    assert jnp.allclose(recon, r_ref, atol=2e-3, rtol=1e-3), "recon mismatch"
    assert jnp.allclose(mu, mu_ref, atol=2e-3, rtol=1e-3), "mu mismatch"
    assert jnp.allclose(logvar, lv_ref, atol=2e-3, rtol=1e-3), "logvar mismatch"


if __name__ == "__main__":
    input_dim, latent_dim, hidden = 3, 2, 16

    key = jax.random.PRNGKey(0)
    k_params, k_x, k_eps, k_x2, k_eps2 = jax.random.split(key, 5)

    params = init_params(k_params, input_dim=input_dim, latent_dim=latent_dim,
                         hidden=hidden)
    packed = pack_params(params, input_dim, latent_dim, hidden)

    # Small case (single grid step).
    batch = 8
    x = jax.random.normal(k_x, (batch, input_dim), jnp.float32)
    eps = jax.random.normal(k_eps, (batch, latent_dim), jnp.float32)
    _check(x, eps, params, packed, input_dim, latent_dim, block_rows=512)

    # Larger, non-aligned batch exercising grid > 1, batch padding and the
    # "parallel" grid axis.
    batch2 = 300
    x2 = jax.random.normal(k_x2, (batch2, input_dim), jnp.float32)
    eps2 = jax.random.normal(k_eps2, (batch2, latent_dim), jnp.float32)
    _check(x2, eps2, params, packed, input_dim, latent_dim, block_rows=128)

    print("KERNEL_OK")
</pallas_src>

<mosaic_0001>
module attributes {stable_mosaic.version = 11 : i64} {
  func.func @_vae_kernel(%arg0: i32, %arg1: memref<8x128xbf16, #tpu.memory_space<vmem>>, %arg2: memref<8x128xf32, #tpu.memory_space<vmem>>, %arg3: memref<128x128xbf16, #tpu.memory_space<vmem>>, %arg4: memref<128x256xbf16, #tpu.memory_space<vmem>>, %arg5: memref<128x128xbf16, #tpu.memory_space<vmem>>, %arg6: memref<128x128xbf16, #tpu.memory_space<vmem>>, %arg7: memref<8x256xf32, #tpu.memory_space<vmem>>, %arg8: memref<8x128xf32, #tpu.memory_space<vmem>>) attributes {dimension_semantics = [#tpu.dimension_semantics<parallel>], iteration_bounds = array<i64: 1>, scalar_prefetch = 0 : i64, scratch_operands = 0 : i64, tpu.core_type = #tpu.core_type<tc>, window_params = [{transform_indices = @transform_0, window_bounds = array<i64: 8, 128>}, {transform_indices = @transform_1, window_bounds = array<i64: 8, 128>}, {pipeline_mode = #tpu.pipeline_mode<synchronous>, transform_indices = @transform_2, window_bounds = array<i64: 128, 128>}, {pipeline_mode = #tpu.pipeline_mode<synchronous>, transform_indices = @transform_3, window_bounds = array<i64: 128, 256>}, {pipeline_mode = #tpu.pipeline_mode<synchronous>, transform_indices = @transform_4, window_bounds = array<i64: 128, 128>}, {pipeline_mode = #tpu.pipeline_mode<synchronous>, transform_indices = @transform_5, window_bounds = array<i64: 128, 128>}, {transform_indices = @transform_6, window_bounds = array<i64: 8, 256>}, {transform_indices = @transform_7, window_bounds = array<i64: 8, 128>}]} {
    %c0 = arith.constant 0 : index
    %c0_0 = arith.constant 0 : index
    %0 = vector.load %arg1[%c0, %c0_0] : memref<8x128xbf16, #tpu.memory_space<vmem>>, vector<8x128xbf16>
    %c0_1 = arith.constant 0 : index
    %c0_2 = arith.constant 0 : index
    %1 = vector.load %arg2[%c0_1, %c0_2] : memref<8x128xf32, #tpu.memory_space<vmem>>, vector<8x128xf32>
    %c0_3 = arith.constant 0 : index
    %c0_4 = arith.constant 0 : index
    %2 = vector.load %arg3[%c0_3, %c0_4] : memref<128x128xbf16, #tpu.memory_space<vmem>>, vector<128x128xbf16>
    %cst = arith.constant dense<0.000000e+00> : vector<8x128xf32>
    %3 = tpu.matmul %0, %2, %cst {dimension_numbers = #tpu.dot_dimension_numbers<[1], [0], [0], [1], [0, 0, 1, 1], [], []>} : vector<8x128xbf16>, vector<128x128xbf16>, vector<8x128xf32> -> vector<8x128xf32>
    %cst_5 = arith.constant 0.000000e+00 : f32
    %4 = vector.broadcast %cst_5 : f32 to vector<8x128xf32>
    %5 = arith.maximumf %3, %4 : vector<8x128xf32>
    %6 = arith.truncf %5 : vector<8x128xf32> to vector<8x128xbf16>
    %c0_6 = arith.constant 0 : index
    %c0_7 = arith.constant 0 : index
    %7 = vector.load %arg4[%c0_6, %c0_7] : memref<128x256xbf16, #tpu.memory_space<vmem>>, vector<128x256xbf16>
    %cst_8 = arith.constant dense<0.000000e+00> : vector<8x256xf32>
    %8 = tpu.matmul %6, %7, %cst_8 {dimension_numbers = #tpu.dot_dimension_numbers<[1], [0], [0], [1], [0, 0, 1, 1], [], []>} : vector<8x128xbf16>, vector<128x256xbf16>, vector<8x256xf32> -> vector<8x256xf32>
    %9 = vector.extract_strided_slice %8 {offsets = [0, 0], sizes = [8, 128], strides = [1, 1]} : vector<8x256xf32> to vector<8x128xf32>
    %10 = vector.extract_strided_slice %8 {offsets = [0, 128], sizes = [8, 128], strides = [1, 1]} : vector<8x256xf32> to vector<8x128xf32>
    %cst_9 = arith.constant 5.000000e-01 : f32
    %11 = vector.broadcast %cst_9 : f32 to vector<8x128xf32>
    %12 = arith.mulf %11, %10 : vector<8x128xf32>
    %13 = math.exp %12 : vector<8x128xf32>
    %14 = arith.mulf %1, %13 : vector<8x128xf32>
    %15 = arith.addf %9, %14 : vector<8x128xf32>
    %16 = arith.truncf %15 : vector<8x128xf32> to vector<8x128xbf16>
    %c0_10 = arith.constant 0 : index
    %c0_11 = arith.constant 0 : index
    %17 = vector.load %arg5[%c0_10, %c0_11] : memref<128x128xbf16, #tpu.memory_space<vmem>>, vector<128x128xbf16>
    %cst_12 = arith.constant dense<0.000000e+00> : vector<8x128xf32>
    %18 = tpu.matmul %16, %17, %cst_12 {dimension_numbers = #tpu.dot_dimension_numbers<[1], [0], [0], [1], [0, 0, 1, 1], [], []>} : vector<8x128xbf16>, vector<128x128xbf16>, vector<8x128xf32> -> vector<8x128xf32>
    %cst_13 = arith.constant 0.000000e+00 : f32
    %19 = vector.broadcast %cst_13 : f32 to vector<8x128xf32>
    %20 = arith.maximumf %18, %19 : vector<8x128xf32>
    %21 = arith.truncf %20 : vector<8x128xf32> to vector<8x128xbf16>
    %c0_14 = arith.constant 0 : index
    %c0_15 = arith.constant 0 : index
    %22 = vector.load %arg6[%c0_14, %c0_15] : memref<128x128xbf16, #tpu.memory_space<vmem>>, vector<128x128xbf16>
    %cst_16 = arith.constant dense<0.000000e+00> : vector<8x128xf32>
    %23 = tpu.matmul %21, %22, %cst_16 {dimension_numbers = #tpu.dot_dimension_numbers<[1], [0], [0], [1], [0, 0, 1, 1], [], []>} : vector<8x128xbf16>, vector<128x128xbf16>, vector<8x128xf32> -> vector<8x128xf32>
    %c0_17 = arith.constant 0 : index
    %c0_18 = arith.constant 0 : index
    %24 = vector.load %arg7[%c0_17, %c0_18] : memref<8x256xf32, #tpu.memory_space<vmem>>, vector<8x256xf32>
    tpu.vector_store %arg7[%c0_17, %c0_18], %8 {strides = array<i32>} : memref<8x256xf32, #tpu.memory_space<vmem>>, vector<8x256xf32>,
    %c0_19 = arith.constant 0 : index
    %c0_20 = arith.constant 0 : index
    %25 = vector.load %arg8[%c0_19, %c0_20] : memref<8x128xf32, #tpu.memory_space<vmem>>, vector<8x128xf32>
    tpu.vector_store %arg8[%c0_19, %c0_20], %23 {strides = array<i32>} : memref<8x128xf32, #tpu.memory_space<vmem>>, vector<8x128xf32>,
    return
  }
  func.func @transform_0(%arg0: i32) -> (i32, i32) {
    %c0_i32 = arith.constant 0 : i32
    %c0_i32_0 = arith.constant 0 : i32
    return %arg0, %c0_i32 : i32, i32
  }
  func.func @transform_1(%arg0: i32) -> (i32, i32) {
    %c0_i32 = arith.constant 0 : i32
    %c0_i32_0 = arith.constant 0 : i32
    return %arg0, %c0_i32 : i32, i32
  }
  func.func @transform_2(%arg0: i32) -> (i32, i32) {
    %c0_i32 = arith.constant 0 : i32
    %c0_i32_0 = arith.constant 0 : i32
    %c0_i32_1 = arith.constant 0 : i32
    return %c0_i32, %c0_i32_0 : i32, i32
  }
  func.func @transform_3(%arg0: i32) -> (i32, i32) {
    %c0_i32 = arith.constant 0 : i32
    %c0_i32_0 = arith.constant 0 : i32
    %c0_i32_1 = arith.constant 0 : i32
    return %c0_i32, %c0_i32_0 : i32, i32
  }
  func.func @transform_4(%arg0: i32) -> (i32, i32) {
    %c0_i32 = arith.constant 0 : i32
    %c0_i32_0 = arith.constant 0 : i32
    %c0_i32_1 = arith.constant 0 : i32
    return %c0_i32, %c0_i32_0 : i32, i32
  }
  func.func @transform_5(%arg0: i32) -> (i32, i32) {
    %c0_i32 = arith.constant 0 : i32
    %c0_i32_0 = arith.constant 0 : i32
    %c0_i32_1 = arith.constant 0 : i32
    return %c0_i32, %c0_i32_0 : i32, i32
  }
  func.func @transform_6(%arg0: i32) -> (i32, i32) {
    %c0_i32 = arith.constant 0 : i32
    %c0_i32_0 = arith.constant 0 : i32
    return %arg0, %c0_i32 : i32, i32
  }
  func.func @transform_7(%arg0: i32) -> (i32, i32) {
    %c0_i32 = arith.constant 0 : i32
    %c0_i32_0 = arith.constant 0 : i32
    return %arg0, %c0_i32 : i32, i32
  }
}

</mosaic_0001>

<llo_original>
// kernel: tpu_custom_call.1
$region0: #{tpu_custom_call.1}
  #allocation0 [shape = 'u32[]', space=smem, size = 0x4, offset = 0x4, fixed_abs, tag = 'smem constant byte address 0x4 - core index']
  #allocation1 [shape = 'u32[144,128]{1,0:T(1,128)}', space=vmem, size = 0x12000, scoped, tag = 'internal scratch']
  %s0 = inlined_call_operand.hbm [shape: bf16[8,128], index: 0, kind: input, shape index: {}]
  %s1 = inlined_call_operand.hbm [shape: f32[8,128], index: 1, kind: input, shape index: {}]
  %s2 = inlined_call_operand.hbm [shape: bf16[128,128], index: 2, kind: input, shape index: {}]
  %s3 = inlined_call_operand.hbm [shape: bf16[128,256], index: 3, kind: input, shape index: {}]
  %s4 = inlined_call_operand.hbm [shape: bf16[128,128], index: 4, kind: input, shape index: {}]
  %s5 = inlined_call_operand.hbm [shape: bf16[128,128], index: 5, kind: input, shape index: {}]
  %s6 = inlined_call_operand.hbm [shape: f32[8,256], index: 6, kind: output, shape index: {0}]
  %s7 = inlined_call_operand.hbm [shape: f32[8,128], index: 7, kind: output, shape index: {1}]
  %8 = xla_tuple %s6, %s7
  %s9 = sld [smem:[#allocation0]]
  $region66: #{tpu_custom_call.1} parent=0
    _
  %s11 = ssub.s32 1, %s9
  %s12 = scalar_select 0, %s11, %s9
  $region1: #{tpu_custom_call.1} parent=0
    #allocation2 [shape = 'u8[2048]{0}', space=vmem, size = 0x800, scoped, tag = 'input window, operand 0, single buffered']
    #allocation3 [shape = 's32[1]{0}', space=sflag, size = 0x4, scoped, tag = 'scoped memory for tpu_custom_call.1']
    #allocation4 [shape = 's32[1]{0}', space=sflag, size = 0x4, scoped, tag = 'scoped memory for tpu_custom_call.1']
    #allocation5 [shape = 'u8[4096]{0}', space=vmem, size = 0x1000, scoped, tag = 'input window, operand 1, single buffered']
    #allocation6 [shape = 's32[1]{0}', space=sflag, size = 0x4, scoped, tag = 'scoped memory for tpu_custom_call.1']
    #allocation7 [shape = 'u8[32768]{0}', space=vmem, size = 0x8000, scoped, tag = 'input window, operand 2, single buffered']
    #allocation8 [shape = 'u8[65536]{0}', space=vmem, size = 0x10000, scoped, tag = 'input window, operand 3, single buffered']
    #allocation9 [shape = 's32[1]{0}', space=sflag, size = 0x4, scoped, tag = 'scoped memory for tpu_custom_call.1']
    #allocation10 [shape = 'u8[32768]{0}', space=vmem, size = 0x8000, scoped, tag = 'input window, operand 4, single buffered']
    #allocation11 [shape = 'u8[32768]{0}', space=vmem, size = 0x8000, scoped, tag = 'input window, operand 5, single buffered']
    #allocation12 [shape = 's32[1]{0}', space=sflag, size = 0x4, scoped, tag = 'scoped memory for tpu_custom_call.1']
    #allocation13 [shape = 'u8[8192]{0}', space=vmem, size = 0x2000, scoped, tag = 'output window, operand 0, single buffered']
    #allocation14 [shape = 'u8[4096]{0}', space=vmem, size = 0x1000, scoped, tag = 'output window, operand 1, single buffered']
    #allocation15 [shape = 's32[1]{0}', space=sflag, size = 0x4, scoped, tag = 'scoped memory for tpu_custom_call.1']
    %13 = vsyncpa [#allocation3], 0
    %14 = vsyncpa [#allocation6], 0
    %15 = vsyncpa [#allocation9], 0
    %16 = vsyncpa [#allocation12], 0
    %17 = vsyncpa [#allocation4], 0
    %18 = vsyncpa [#allocation15], 0
    // Predicated region
    $region2: #{tpu_custom_call.1} parent=1 // pred_check
      _
    $region3: #{tpu_custom_call.1} parent=1 // pred_check_branch
      %20 = sbr.rel (0) target = $region5
    $region4: #{tpu_custom_call.1} parent=1 // pred_region
      %s22 = ssub.s32 64, 64
      %23 = vsyncadd [#allocation3], %s22
      %s25 = sshll.u32 [#allocation2], 4
      %s26 = int_to_ptr.vmem [resolvable:$true] %s25
      %28 = dma.hbm_to_vmem [thread:$0]  %s0, 64, %s26, [#allocation3]
    $region5: #{tpu_custom_call.1} parent=1 // pred_fallthru
      _
    // Predicated region
    $region6: #{tpu_custom_call.1} parent=1 // pred_check
      _
    $region7: #{tpu_custom_call.1} parent=1 // pred_check_branch
      %30 = sbr.rel (0) target = $region9
    $region8: #{tpu_custom_call.1} parent=1 // pred_region
      %s32 = ssub.s32 128, 128
      %33 = vsyncadd [#allocation6], %s32
      %s35 = sshll.u32 [#allocation5], 4
      %s36 = int_to_ptr.vmem [resolvable:$true] %s35
      %38 = dma.hbm_to_vmem [thread:$0]  %s1, 128, %s36, [#allocation6]
    $region9: #{tpu_custom_call.1} parent=1 // pred_fallthru
      _
    // Predicated region
    $region10: #{tpu_custom_call.1} parent=1 // pred_check
      _
    $region11: #{tpu_custom_call.1} parent=1 // pred_check_branch
      %40 = sbr.rel (0) target = $region13
    $region12: #{tpu_custom_call.1} parent=1 // pred_region
      %s42 = ssub.s32 1024, 1024
      %43 = vsyncadd [#allocation6], %s42
      %s44 = sshll.u32 [#allocation7], 4
      %s45 = int_to_ptr.vmem [resolvable:$true] %s44
      %50 = dma.hbm_to_vmem [thread:$0]  %s2, 1024, %s45, [#allocation6], 64, 64, 4
    $region13: #{tpu_custom_call.1} parent=1 // pred_fallthru
      _
    // Predicated region
    $region14: #{tpu_custom_call.1} parent=1 // pred_check
      _
    $region15: #{tpu_custom_call.1} parent=1 // pred_check_branch
      %52 = sbr.rel (0) target = $region17
    $region16: #{tpu_custom_call.1} parent=1 // pred_region
      %s54 = ssub.s32 2048, 2048
      %55 = vsyncadd [#allocation9], %s54
      %s56 = sshll.u32 [#allocation8], 4
      %s57 = int_to_ptr.vmem [resolvable:$true] %s56
      %62 = dma.hbm_to_vmem [thread:$0]  %s3, 2048, %s57, [#allocation9], 128, 128, 8
    $region17: #{tpu_custom_call.1} parent=1 // pred_fallthru
      _
    // Predicated region
    $region18: #{tpu_custom_call.1} parent=1 // pred_check
      _
    $region19: #{tpu_custom_call.1} parent=1 // pred_check_branch
      %64 = sbr.rel (0) target = $region21
    $region20: #{tpu_custom_call.1} parent=1 // pred_region
      %s66 = ssub.s32 1024, 1024
      %67 = vsyncadd [#allocation9], %s66
      %s68 = sshll.u32 [#allocation10], 4
      %s69 = int_to_ptr.vmem [resolvable:$true] %s68
      %74 = dma.hbm_to_vmem [thread:$0]  %s4, 1024, %s69, [#allocation9], 64, 64, 4
    $region21: #{tpu_custom_call.1} parent=1 // pred_fallthru
      _
    // Predicated region
    $region22: #{tpu_custom_call.1} parent=1 // pred_check
      _
    $region23: #{tpu_custom_call.1} parent=1 // pred_check_branch
      %76 = sbr.rel (0) target = $region25
    $region24: #{tpu_custom_call.1} parent=1 // pred_region
      %s78 = ssub.s32 1024, 1024
      %79 = vsyncadd [#allocation12], %s78
      %s80 = sshll.u32 [#allocation11], 4
      %s81 = int_to_ptr.vmem [resolvable:$true] %s80
      %86 = dma.hbm_to_vmem [thread:$0]  %s5, 1024, %s81, [#allocation12], 64, 64, 4
    $region25: #{tpu_custom_call.1} parent=1 // pred_fallthru
      _
    // Predicated region
    $region26: #{tpu_custom_call.1} parent=1 // pred_check
      _
    $region27: #{tpu_custom_call.1} parent=1 // pred_check_branch
      %88 = sbr.rel (0) target = $region29
    $region28: #{tpu_custom_call.1} parent=1 // pred_region
      %89 = dma.done [#allocation3], 64
    $region29: #{tpu_custom_call.1} parent=1 // pred_fallthru
      _
    // Predicated region
    $region30: #{tpu_custom_call.1} parent=1 // pred_check
      _
    $region31: #{tpu_custom_call.1} parent=1 // pred_check_branch
      %91 = sbr.rel (0) target = $region33
    $region32: #{tpu_custom_call.1} parent=1 // pred_region
      %92 = dma.done [#allocation6], 128
    $region33: #{tpu_custom_call.1} parent=1 // pred_fallthru
      _
    // Predicated region
    $region34: #{tpu_custom_call.1} parent=1 // pred_check
      _
    $region35: #{tpu_custom_call.1} parent=1 // pred_check_branch
      %94 = sbr.rel (0) target = $region37
    $region36: #{tpu_custom_call.1} parent=1 // pred_region
      %95 = dma.done [#allocation6], 1024
    $region37: #{tpu_custom_call.1} parent=1 // pred_fallthru
      _
    // Predicated region
    $region38: #{tpu_custom_call.1} parent=1 // pred_check
      _
    $region39: #{tpu_custom_call.1} parent=1 // pred_check_branch
      %97 = sbr.rel (0) target = $region41
    $region40: #{tpu_custom_call.1} parent=1 // pred_region
      %98 = dma.done [#allocation9], 2048
    $region41: #{tpu_custom_call.1} parent=1 // pred_fallthru
      _
    // Predicated region
    $region42: #{tpu_custom_call.1} parent=1 // pred_check
      _
    $region43: #{tpu_custom_call.1} parent=1 // pred_check_branch
      %100 = sbr.rel (0) target = $region45
    $region44: #{tpu_custom_call.1} parent=1 // pred_region
      %101 = dma.done [#allocation9], 1024
    $region45: #{tpu_custom_call.1} parent=1 // pred_fallthru
      _
    // Predicated region
    $region46: #{tpu_custom_call.1} parent=1 // pred_check
      _
    $region47: #{tpu_custom_call.1} parent=1 // pred_check_branch
      %103 = sbr.rel (0) target = $region49
    $region48: #{tpu_custom_call.1} parent=1 // pred_region
      %104 = dma.done [#allocation12], 1024
    $region49: #{tpu_custom_call.1} parent=1 // pred_fallthru
      _
    %v106 = vld [vmem:[#allocation2] sm:$0xf]
    %v107 = vld [vmem:[#allocation5] sm:$0xff]
    %v108 = vld [vmem:[#allocation7] sm:$0xf]
    %v109 = vld [vmem:[#allocation7 + $0x4] sm:$0xf]
    %v110 = vld [vmem:[#allocation7 + $0x8] sm:$0xf]
    %v111 = vld [vmem:[#allocation7 + $0xc] sm:$0xf]
    %v112 = vld [vmem:[#allocation7 + $0x10] sm:$0xf]
    %v113 = vld [vmem:[#allocation7 + $0x14] sm:$0xf]
    %v114 = vld [vmem:[#allocation7 + $0x18] sm:$0xf]
    %v115 = vld [vmem:[#allocation7 + $0x1c] sm:$0xf]
    %v116 = vld [vmem:[#allocation7 + $0x20] sm:$0xf]
    %v117 = vld [vmem:[#allocation7 + $0x24] sm:$0xf]
    %v118 = vld [vmem:[#allocation7 + $0x28] sm:$0xf]
    %v119 = vld [vmem:[#allocation7 + $0x2c] sm:$0xf]
    %v120 = vld [vmem:[#allocation7 + $0x30] sm:$0xf]
    %v121 = vld [vmem:[#allocation7 + $0x34] sm:$0xf]
    %v122 = vld [vmem:[#allocation7 + $0x38] sm:$0xf]
    %v123 = vld [vmem:[#allocation7 + $0x3c] sm:$0xf]
    %v140 = vunpack.c.l.b16 %v108
    %v141 = vunpack.c.l.b16 %v109
    %v142 = vunpack.c.l.b16 %v110
    %v143 = vunpack.c.l.b16 %v111
    %v144 = vunpack.c.l.b16 %v112
    %v145 = vunpack.c.l.b16 %v113
    %v146 = vunpack.c.l.b16 %v114
    %v147 = vunpack.c.l.b16 %v115
    %v148 = vunpack.c.l.b16 %v116
    %v149 = vunpack.c.l.b16 %v117
    %v150 = vunpack.c.l.b16 %v118
    %v151 = vunpack.c.l.b16 %v119
    %v152 = vunpack.c.l.b16 %v120
    %v153 = vunpack.c.l.b16 %v121
    %v154 = vunpack.c.l.b16 %v122
    %v155 = vunpack.c.l.b16 %v123
    %v156 = vpack.c.b16 %v141, %v140
    %v157 = vpack.c.b16 %v143, %v142
    %v158 = vpack.c.b16 %v145, %v144
    %v159 = vpack.c.b16 %v147, %v146
    %v160 = vpack.c.b16 %v149, %v148
    %v161 = vpack.c.b16 %v151, %v150
    %v162 = vpack.c.b16 %v153, %v152
    %v163 = vpack.c.b16 %v155, %v154
    %172 = vmatprep.subr.bf16.mxu0 0
    %173 = vmatpush1.bf16.msra.mxu0 %v156
    %174 = vmatprep.subr.bf16.mxu0 0
    %175 = vmatpush1.bf16.msra.mxu0 %v157
    %176 = vmatprep.subr.bf16.mxu0 0
    %177 = vmatpush1.bf16.msra.mxu0 %v158
    %178 = vmatprep.subr.bf16.mxu0 0
    %179 = vmatpush1.bf16.msra.mxu0 %v159
    %180 = vmatprep.subr.bf16.mxu0 0
    %181 = vmatpush1.bf16.msra.mxu0 %v160
    %182 = vmatprep.subr.bf16.mxu0 0
    %183 = vmatpush1.bf16.msra.mxu0 %v161
    %184 = vmatprep.subr.bf16.mxu0 0
    %185 = vmatpush1.bf16.msra.mxu0 %v162
    %186 = vmatprep.subr.bf16.mxu0 0
    %187 = vmatpush1.bf16.msra.mxu0 %v163
    %188 = vmatprep.subr.bf16.mxu0 0
    %189 = vmatpush1.bf16.msra.mxu0 0
    %190 = vmatprep.subr.bf16.mxu0 0
    %191 = vmatpush1.bf16.msra.mxu0 0
    %192 = vmatprep.subr.bf16.mxu0 0
    %193 = vmatpush1.bf16.msra.mxu0 0
    %194 = vmatprep.subr.bf16.mxu0 0
    %195 = vmatpush1.bf16.msra.mxu0 0
    %196 = vmatprep.subr.bf16.mxu0 0
    %197 = vmatpush1.bf16.msra.mxu0 0
    %198 = vmatprep.subr.bf16.mxu0 0
    %199 = vmatpush1.bf16.msra.mxu0 0
    %200 = vmatprep.subr.bf16.mxu0 0
    %201 = vmatpush1.bf16.msra.mxu0 0
    %202 = vmatprep.subr.bf16.mxu0 0
    %203 = vmatpush1.bf16.msra.mxu0 0
    %204 = vmatprep.mubr.bf16.mxu0 0
    %205 = vmatmul.mubr.bf16.gmra.mrb[0].mxu0 %v106
    %v206 = vpop.f32.mrb[0].mxu0
    %v207 = vadd.f32 0.0, %v206
    %v208 = vpop.f32.mrb[0].mxu0
    %v209 = vpop.f32.mrb[0].mxu0
    %v210 = vpop.f32.mrb[0].mxu0
    %211 = vdwg.mxu0
    %v212 = vmax.f32 %v207, 0.0
    %v213 = vpack.c.bf16 %v212, %v212
    %v214 = vld [vmem:[#allocation8] sm:$0xff]
    %v215 = vld [vmem:[#allocation8 + $0x8] sm:$0xff]
    %v216 = vld [vmem:[#allocation8 + $0x10] sm:$0xff]
    %v217 = vld [vmem:[#allocation8 + $0x18] sm:$0xff]
    %v218 = vld [vmem:[#allocation8 + $0x20] sm:$0xff]
    %v219 = vld [vmem:[#allocation8 + $0x28] sm:$0xff]
    %v220 = vld [vmem:[#allocation8 + $0x30] sm:$0xff]
    %v221 = vld [vmem:[#allocation8 + $0x38] sm:$0xff]
    %v222 = vld [vmem:[#allocation8 + $0x40] sm:$0xff]
    %v223 = vld [vmem:[#allocation8 + $0x48] sm:$0xff]
    %v224 = vld [vmem:[#allocation8 + $0x50] sm:$0xff]
    %v225 = vld [vmem:[#allocation8 + $0x58] sm:$0xff]
    %v226 = vld [vmem:[#allocation8 + $0x60] sm:$0xff]
    %v227 = vld [vmem:[#allocation8 + $0x68] sm:$0xff]
    %v228 = vld [vmem:[#allocation8 + $0x70] sm:$0xff]
    %v229 = vld [vmem:[#allocation8 + $0x78] sm:$0xff]
    %v246 = vunpack.c.l.b16 %v214
    %v247 = vunpack.c.h.b16 %v214
    %v248 = vunpack.c.l.b16 %v215
    %v249 = vunpack.c.h.b16 %v215
    %v250 = vunpack.c.l.b16 %v216
    %v251 = vunpack.c.h.b16 %v216
    %v252 = vunpack.c.l.b16 %v217
    %v253 = vunpack.c.h.b16 %v217
    %v254 = vunpack.c.l.b16 %v218
    %v255 = vunpack.c.h.b16 %v218
    %v256 = vunpack.c.l.b16 %v219
    %v257 = vunpack.c.h.b16 %v219
    %v258 = vunpack.c.l.b16 %v220
    %v259 = vunpack.c.h.b16 %v220
    %v260 = vunpack.c.l.b16 %v221
    %v261 = vunpack.c.h.b16 %v221
    %v262 = vunpack.c.l.b16 %v222
    %v263 = vunpack.c.h.b16 %v222
    %v264 = vunpack.c.l.b16 %v223
    %v265 = vunpack.c.h.b16 %v223
    %v266 = vunpack.c.l.b16 %v224
    %v267 = vunpack.c.h.b16 %v224
    %v268 = vunpack.c.l.b16 %v225
    %v269 = vunpack.c.h.b16 %v225
    %v270 = vunpack.c.l.b16 %v226
    %v271 = vunpack.c.h.b16 %v226
    %v272 = vunpack.c.l.b16 %v227
    %v273 = vunpack.c.h.b16 %v227
    %v274 = vunpack.c.l.b16 %v228
    %v275 = vunpack.c.h.b16 %v228
    %v276 = vunpack.c.l.b16 %v229
    %v277 = vunpack.c.h.b16 %v229
    %v278 = vpack.c.b16 %v248, %v246
    %v279 = vpack.c.b16 %v249, %v247
    %v280 = vpack.c.b16 %v252, %v250
    %v281 = vpack.c.b16 %v253, %v251
    %v282 = vpack.c.b16 %v256, %v254
    %v283 = vpack.c.b16 %v257, %v255
    %v284 = vpack.c.b16 %v260, %v258
    %v285 = vpack.c.b16 %v261, %v259
    %v286 = vpack.c.b16 %v264, %v262
    %v287 = vpack.c.b16 %v265, %v263
    %v288 = vpack.c.b16 %v268, %v266
    %v289 = vpack.c.b16 %v269, %v267
    %v290 = vpack.c.b16 %v272, %v270
    %v291 = vpack.c.b16 %v273, %v271
    %v292 = vpack.c.b16 %v276, %v274
    %v293 = vpack.c.b16 %v277, %v275
    %310 = vmatprep.subr.bf16.mxu0 %v279
    %311 = vmatpush1.bf16.msra.mxu0 %v278
    %312 = vmatprep.subr.bf16.mxu0 %v281
    %313 = vmatpush1.bf16.msra.mxu0 %v280
    %314 = vmatprep.subr.bf16.mxu0 %v283
    %315 = vmatpush1.bf16.msra.mxu0 %v282
    %316 = vmatprep.subr.bf16.mxu0 %v285
    %317 = vmatpush1.bf16.msra.mxu0 %v284
    %318 = vmatprep.subr.bf16.mxu0 %v287
    %319 = vmatpush1.bf16.msra.mxu0 %v286
    %320 = vmatprep.subr.bf16.mxu0 %v289
    %321 = vmatpush1.bf16.msra.mxu0 %v288
    %322 = vmatprep.subr.bf16.mxu0 %v291
    %323 = vmatpush1.bf16.msra.mxu0 %v290
    %324 = vmatprep.subr.bf16.mxu0 %v293
    %325 = vmatpush1.bf16.msra.mxu0 %v292
    %326 = vmatprep.subr.bf16.mxu0 0
    %327 = vmatpush1.bf16.msra.mxu0 0
    %328 = vmatprep.subr.bf16.mxu0 0
    %329 = vmatpush1.bf16.msra.mxu0 0
    %330 = vmatprep.subr.bf16.mxu0 0
    %331 = vmatpush1.bf16.msra.mxu0 0
    %332 = vmatprep.subr.bf16.mxu0 0
    %333 = vmatpush1.bf16.msra.mxu0 0
    %334 = vmatprep.subr.bf16.mxu0 0
    %335 = vmatpush1.bf16.msra.mxu0 0
    %336 = vmatprep.subr.bf16.mxu0 0
    %337 = vmatpush1.bf16.msra.mxu0 0
    %338 = vmatprep.subr.bf16.mxu0 0
    %339 = vmatpush1.bf16.msra.mxu0 0
    %340 = vmatprep.subr.bf16.mxu0 0
    %341 = vmatpush1.bf16.msra.mxu0 0
    %342 = vmatprep.mubr.bf16.mxu0 0
    %343 = vmatmul.mubr.bf16.gmra.mrb[0].mxu0 %v213
    %v344 = vpop.f32.mrb[0].mxu0
    %v345 = vadd.f32 0.0, %v344
    %v346 = vpop.f32.mrb[0].mxu0
    %v347 = vadd.f32 0.0, %v346
    %v348 = vpop.f32.mrb[0].mxu0
    %v349 = vpop.f32.mrb[0].mxu0
    %350 = vdwg.mxu0
    %v351 = vmul.f32 %v347, 0.5
    %v352 = vmul.f32 %v351, 1.442695
    %v353 = vpow.pop %v352
    %v354 = vmul.f32 %v107, %v353
    %v355 = vadd.f32 %v345, %v354
    %v356 = vpack.c.bf16 %v355, %v355
    %v357 = vld [vmem:[#allocation10] sm:$0xf]
    %v358 = vld [vmem:[#allocation10 + $0x4] sm:$0xf]
    %v359 = vld [vmem:[#allocation10 + $0x8] sm:$0xf]
    %v360 = vld [vmem:[#allocation10 + $0xc] sm:$0xf]
    %v361 = vld [vmem:[#allocation10 + $0x10] sm:$0xf]
    %v362 = vld [vmem:[#allocation10 + $0x14] sm:$0xf]
    %v363 = vld [vmem:[#allocation10 + $0x18] sm:$0xf]
    %v364 = vld [vmem:[#allocation10 + $0x1c] sm:$0xf]
    %v365 = vld [vmem:[#allocation10 + $0x20] sm:$0xf]
    %v366 = vld [vmem:[#allocation10 + $0x24] sm:$0xf]
    %v367 = vld [vmem:[#allocation10 + $0x28] sm:$0xf]
    %v368 = vld [vmem:[#allocation10 + $0x2c] sm:$0xf]
    %v369 = vld [vmem:[#allocation10 + $0x30] sm:$0xf]
    %v370 = vld [vmem:[#allocation10 + $0x34] sm:$0xf]
    %v371 = vld [vmem:[#allocation10 + $0x38] sm:$0xf]
    %v372 = vld [vmem:[#allocation10 + $0x3c] sm:$0xf]
    %v389 = vunpack.c.l.b16 %v357
    %v390 = vunpack.c.l.b16 %v358
    %v391 = vunpack.c.l.b16 %v359
    %v392 = vunpack.c.l.b16 %v360
    %v393 = vunpack.c.l.b16 %v361
    %v394 = vunpack.c.l.b16 %v362
    %v395 = vunpack.c.l.b16 %v363
    %v396 = vunpack.c.l.b16 %v364
    %v397 = vunpack.c.l.b16 %v365
    %v398 = vunpack.c.l.b16 %v366
    %v399 = vunpack.c.l.b16 %v367
    %v400 = vunpack.c.l.b16 %v368
    %v401 = vunpack.c.l.b16 %v369
    %v402 = vunpack.c.l.b16 %v370
    %v403 = vunpack.c.l.b16 %v371
    %v404 = vunpack.c.l.b16 %v372
    %v405 = vpack.c.b16 %v390, %v389
    %v406 = vpack.c.b16 %v392, %v391
    %v407 = vpack.c.b16 %v394, %v393
    %v408 = vpack.c.b16 %v396, %v395
    %v409 = vpack.c.b16 %v398, %v397
    %v410 = vpack.c.b16 %v400, %v399
    %v411 = vpack.c.b16 %v402, %v401
    %v412 = vpack.c.b16 %v404, %v403
    %421 = vmatprep.subr.bf16.mxu0 0
    %422 = vmatpush1.bf16.msra.mxu0 %v405
    %423 = vmatprep.subr.bf16.mxu0 0
    %424 = vmatpush1.bf16.msra.mxu0 %v406
    %425 = vmatprep.subr.bf16.mxu0 0
    %426 = vmatpush1.bf16.msra.mxu0 %v407
    %427 = vmatprep.subr.bf16.mxu0 0
    %428 = vmatpush1.bf16.msra.mxu0 %v408
    %429 = vmatprep.subr.bf16.mxu0 0
    %430 = vmatpush1.bf16.msra.mxu0 %v409
    %431 = vmatprep.subr.bf16.mxu0 0
    %432 = vmatpush1.bf16.msra.mxu0 %v410
    %433 = vmatprep.subr.bf16.mxu0 0
    %434 = vmatpush1.bf16.msra.mxu0 %v411
    %435 = vmatprep.subr.bf16.mxu0 0
    %436 = vmatpush1.bf16.msra.mxu0 %v412
    %437 = vmatprep.subr.bf16.mxu0 0
    %438 = vmatpush1.bf16.msra.mxu0 0
    %439 = vmatprep.subr.bf16.mxu0 0
    %440 = vmatpush1.bf16.msra.mxu0 0
    %441 = vmatprep.subr.bf16.mxu0 0
    %442 = vmatpush1.bf16.msra.mxu0 0
    %443 = vmatprep.subr.bf16.mxu0 0
    %444 = vmatpush1.bf16.msra.mxu0 0
    %445 = vmatprep.subr.bf16.mxu0 0
    %446 = vmatpush1.bf16.msra.mxu0 0
    %447 = vmatprep.subr.bf16.mxu0 0
    %448 = vmatpush1.bf16.msra.mxu0 0
    %449 = vmatprep.subr.bf16.mxu0 0
    %450 = vmatpush1.bf16.msra.mxu0 0
    %451 = vmatprep.subr.bf16.mxu0 0
    %452 = vmatpush1.bf16.msra.mxu0 0
    %453 = vmatprep.mubr.bf16.mxu0 0
    %454 = vmatmul.mubr.bf16.gmra.mrb[0].mxu0 %v356
    %v455 = vpop.f32.mrb[0].mxu0
    %v456 = vadd.f32 0.0, %v455
    %v457 = vpop.f32.mrb[0].mxu0
    %v458 = vpop.f32.mrb[0].mxu0
    %v459 = vpop.f32.mrb[0].mxu0
    %460 = vdwg.mxu0
    %v461 = vmax.f32 %v456, 0.0
    %v462 = vpack.c.bf16 %v461, %v461
    %v463 = vld [vmem:[#allocation11] sm:$0xf]
    %v464 = vld [vmem:[#allocation11 + $0x4] sm:$0xf]
    %v465 = vld [vmem:[#allocation11 + $0x8] sm:$0xf]
    %v466 = vld [vmem:[#allocation11 + $0xc] sm:$0xf]
    %v467 = vld [vmem:[#allocation11 + $0x10] sm:$0xf]
    %v468 = vld [vmem:[#allocation11 + $0x14] sm:$0xf]
    %v469 = vld [vmem:[#allocation11 + $0x18] sm:$0xf]
    %v470 = vld [vmem:[#allocation11 + $0x1c] sm:$0xf]
    %v471 = vld [vmem:[#allocation11 + $0x20] sm:$0xf]
    %v472 = vld [vmem:[#allocation11 + $0x24] sm:$0xf]
    %v473 = vld [vmem:[#allocation11 + $0x28] sm:$0xf]
    %v474 = vld [vmem:[#allocation11 + $0x2c] sm:$0xf]
    %v475 = vld [vmem:[#allocation11 + $0x30] sm:$0xf]
    %v476 = vld [vmem:[#allocation11 + $0x34] sm:$0xf]
    %v477 = vld [vmem:[#allocation11 + $0x38] sm:$0xf]
    %v478 = vld [vmem:[#allocation11 + $0x3c] sm:$0xf]
    %v495 = vunpack.c.l.b16 %v463
    %v496 = vunpack.c.l.b16 %v464
    %v497 = vunpack.c.l.b16 %v465
    %v498 = vunpack.c.l.b16 %v466
    %v499 = vunpack.c.l.b16 %v467
    %v500 = vunpack.c.l.b16 %v468
    %v501 = vunpack.c.l.b16 %v469
    %v502 = vunpack.c.l.b16 %v470
    %v503 = vunpack.c.l.b16 %v471
    %v504 = vunpack.c.l.b16 %v472
    %v505 = vunpack.c.l.b16 %v473
    %v506 = vunpack.c.l.b16 %v474
    %v507 = vunpack.c.l.b16 %v475
    %v508 = vunpack.c.l.b16 %v476
    %v509 = vunpack.c.l.b16 %v477
    %v510 = vunpack.c.l.b16 %v478
    %v511 = vpack.c.b16 %v496, %v495
    %v512 = vpack.c.b16 %v498, %v497
    %v513 = vpack.c.b16 %v500, %v499
    %v514 = vpack.c.b16 %v502, %v501
    %v515 = vpack.c.b16 %v504, %v503
    %v516 = vpack.c.b16 %v506, %v505
    %v517 = vpack.c.b16 %v508, %v507
    %v518 = vpack.c.b16 %v510, %v509
    %527 = vmatprep.subr.bf16.mxu0 0
    %528 = vmatpush1.bf16.msra.mxu0 %v511
    %529 = vmatprep.subr.bf16.mxu0 0
    %530 = vmatpush1.bf16.msra.mxu0 %v512
    %531 = vmatprep.subr.bf16.mxu0 0
    %532 = vmatpush1.bf16.msra.mxu0 %v513
    %533 = vmatprep.subr.bf16.mxu0 0
    %534 = vmatpush1.bf16.msra.mxu0 %v514
    %535 = vmatprep.subr.bf16.mxu0 0
    %536 = vmatpush1.bf16.msra.mxu0 %v515
    %537 = vmatprep.subr.bf16.mxu0 0
    %538 = vmatpush1.bf16.msra.mxu0 %v516
    %539 = vmatprep.subr.bf16.mxu0 0
    %540 = vmatpush1.bf16.msra.mxu0 %v517
    %541 = vmatprep.subr.bf16.mxu0 0
    %542 = vmatpush1.bf16.msra.mxu0 %v518
    %543 = vmatprep.subr.bf16.mxu0 0
    %544 = vmatpush1.bf16.msra.mxu0 0
    %545 = vmatprep.subr.bf16.mxu0 0
    %546 = vmatpush1.bf16.msra.mxu0 0
    %547 = vmatprep.subr.bf16.mxu0 0
    %548 = vmatpush1.bf16.msra.mxu0 0
    %549 = vmatprep.subr.bf16.mxu0 0
    %550 = vmatpush1.bf16.msra.mxu0 0
    %551 = vmatprep.subr.bf16.mxu0 0
    %552 = vmatpush1.bf16.msra.mxu0 0
    %553 = vmatprep.subr.bf16.mxu0 0
    %554 = vmatpush1.bf16.msra.mxu0 0
    %555 = vmatprep.subr.bf16.mxu0 0
    %556 = vmatpush1.bf16.msra.mxu0 0
    %557 = vmatprep.subr.bf16.mxu0 0
    %558 = vmatpush1.bf16.msra.mxu0 0
    %559 = vmatprep.mubr.bf16.mxu0 0
    %560 = vmatmul.mubr.bf16.gmra.mrb[0].mxu0 %v462
    %v561 = vpop.f32.mrb[0].mxu0
    %v562 = vadd.f32 0.0, %v561
    %v563 = vpop.f32.mrb[0].mxu0
    %v564 = vpop.f32.mrb[0].mxu0
    %v565 = vpop.f32.mrb[0].mxu0
    %566 = vdwg.mxu0
    %567 = vst [vmem:[#allocation13] sm:$0xff] %v345
    %568 = vst [vmem:[#allocation13 + $0x8] sm:$0xff] %v347
    %569 = vst [vmem:[#allocation14] sm:$0xff] %v562
    // Predicated region
    $region50: #{tpu_custom_call.1} parent=1 // pred_check
      _
    $region51: #{tpu_custom_call.1} parent=1 // pred_check_branch
      %571 = sbr.rel (0) target = $region53
    $region52: #{tpu_custom_call.1} parent=1 // pred_region
      %s573 = ssub.s32 256, 256
      %574 = vsyncadd [#allocation4], %s573
      %s576 = sshll.u32 [#allocation13], 4
      %s577 = int_to_ptr.vmem [resolvable:$true] %s576
      %579 = dma.vmem_to_hbm [thread:$0]  %s577, 256, %s6, [#allocation4]
    $region53: #{tpu_custom_call.1} parent=1 // pred_fallthru
      _
    // Predicated region
    $region54: #{tpu_custom_call.1} parent=1 // pred_check
      _
    $region55: #{tpu_custom_call.1} parent=1 // pred_check_branch
      %581 = sbr.rel (0) target = $region57
    $region56: #{tpu_custom_call.1} parent=1 // pred_region
      %s583 = ssub.s32 128, 128
      %584 = vsyncadd [#allocation15], %s583
      %s586 = sshll.u32 [#allocation14], 4
      %s587 = int_to_ptr.vmem [resolvable:$true] %s586
      %589 = dma.vmem_to_hbm [thread:$0]  %s587, 128, %s7, [#allocation15]
    $region57: #{tpu_custom_call.1} parent=1 // pred_fallthru
      _
    // Predicated region
    $region58: #{tpu_custom_call.1} parent=1 // pred_check
      _
    $region59: #{tpu_custom_call.1} parent=1 // pred_check_branch
      %591 = sbr.rel (0) target = $region61
    $region60: #{tpu_custom_call.1} parent=1 // pred_region
      %592 = dma.done [#allocation4], 256
    $region61: #{tpu_custom_call.1} parent=1 // pred_fallthru
      _
    // Predicated region
    $region62: #{tpu_custom_call.1} parent=1 // pred_check
      _
    $region63: #{tpu_custom_call.1} parent=1 // pred_check_branch
      %594 = sbr.rel (0) target = $region65
    $region64: #{tpu_custom_call.1} parent=1 // pred_region
      %595 = dma.done [#allocation15], 128
    $region65: #{tpu_custom_call.1} parent=1 // pred_fallthru
      _
    %596 = vsyncpa [#allocation3], 1
    %597 = vsyncpa [#allocation6], 1
    %598 = vsyncpa [#allocation9], 1
    %599 = vsyncpa [#allocation12], 1
    %600 = vsyncpa [#allocation4], 1
    %601 = vsyncpa [#allocation15], 1

</llo_original>
